<compile_context>
chip_gen: v5e
topology: v5e:2x2
jax: 0.10.0
libtpu: 0.0.40
codegen_flags: <defaults>
</compile_context>

<pallas_src>
import jax
import jax.numpy as jnp
from jax.experimental import pallas as pl
from jax.experimental.pallas import tpu as pltpu

_LANE = 128
_TILE_BYTES = 1 << 20   # ~1 MB per f32/u32 tile


def _berdrop_kernel(thr_ref, x_ref, r_ref, o_ref):
    # thr_ref: (1,) int32 in SMEM = round(sigmoid(pies) * 2^24)
    # x_ref / r_ref / o_ref: (tile_m, W) VMEM tiles.
    r24 = (r_ref[...] >> 8).astype(jnp.int32)          # uniform in [0, 2^24)
    keep = r24 < thr_ref[0]                            # Bernoulli(sigmoid(pies))
    o_ref[...] = jnp.where(keep, x_ref[...], jnp.zeros_like(x_ref[...]))


def _choose_width(n):
    for w in (1024, 512, 256, 128):
        if n % w == 0:
            return w
    return None


def berdrop(x, pies, key):
    """Forward pass of BerDrop: x * Bernoulli(sigmoid(pies)).sample(x.shape)."""
    orig_shape = x.shape
    n = x.size

    w = _choose_width(n)
    if w is None:
        # TODO(synk): tail path materializes one padded copy; only hit when the
        # element count is not a multiple of 128 (rare for conv feature maps).
        w = _LANE
        pad = (-n) % w
        flat = jnp.pad(x.reshape(-1), (0, pad))
    else:
        pad = 0
        flat = x.reshape(-1)

    x2d = flat.reshape(-1, w)
    m = x2d.shape[0]

    # ~1 MB tiles (row count multiple of 8); full-array block when m is small.
    tile_m = max(8, _TILE_BYTES // (w * 4))
    if m <= tile_m:
        tile_m = m
    grid = (pl.cdiv(m, tile_m),)

    # Keep-threshold in 24-bit fixed point, computed once outside the kernel.
    p = jax.nn.sigmoid(jnp.asarray(pies, jnp.float32))
    thr = jnp.clip(jnp.round(p * float(1 << 24)), 0.0, float(1 << 24))
    thr = thr.astype(jnp.int32).reshape((1,))

    # Uniform uint32 random bits with the same slab layout as x.
    rbits = jax.random.bits(key, (m, w), dtype=jnp.uint32)

    out2d = pl.pallas_call(
        _berdrop_kernel,
        out_shape=jax.ShapeDtypeStruct((m, w), x.dtype),
        grid=grid,
        in_specs=[
            pl.BlockSpec(memory_space=pltpu.MemorySpace.SMEM),   # threshold
            pl.BlockSpec((tile_m, w), lambda i: (i, 0)),         # x tile
            pl.BlockSpec((tile_m, w), lambda i: (i, 0)),         # random bits
        ],
        out_specs=pl.BlockSpec((tile_m, w), lambda i: (i, 0)),
        compiler_params=pltpu.CompilerParams(
            dimension_semantics=("parallel",),
        ),
    )(thr, x2d, rbits)

    out = out2d.reshape(-1)
    if pad:
        out = out[:n]
    return out.reshape(orig_shape)


if __name__ == "__main__":
    key = jax.random.PRNGKey(0)
    k_x, k_drop = jax.random.split(key)

    # Module __init__: pies = 0.05 scalar parameter.
    pies = jnp.float32(0.05)

    # Small NCHW input, consistent with a conv-style feature map.
    x = jax.random.normal(k_x, (2, 4, 16, 16), dtype=jnp.float32)

    out = berdrop(x, pies, k_drop)
    out = jax.block_until_ready(out)

    # Sanity: every output element is either 0 or exactly equal to x
    # (i.e. x * z with z in {0, 1}), shape/dtype preserved, and the keep
    # fraction is roughly sigmoid(0.05) ~= 0.51.
    is_zero = out == 0.0
    is_same = out == x
    assert bool(jnp.all(is_zero | is_same)), "output is not x * {0,1} mask"
    assert out.shape == x.shape and out.dtype == x.dtype
    keep_frac = float(jnp.mean((out != 0.0).astype(jnp.float32)))
    assert 0.3 < keep_frac < 0.7, f"keep fraction {keep_frac} far from sigmoid(0.05)"

    print("KERNEL_OK")
</pallas_src>

<mosaic_0001>
module attributes {stable_mosaic.version = 11 : i64} {
  func.func @_berdrop_kernel(%arg0: i32, %arg1: memref<1xi32, #tpu.memory_space<smem>>, %arg2: memref<2x1024xf32, #tpu.memory_space<vmem>>, %arg3: memref<2x1024xi32, #tpu.memory_space<vmem>>, %arg4: memref<2x1024xf32, #tpu.memory_space<vmem>>) attributes {dimension_semantics = [#tpu.dimension_semantics<parallel>], iteration_bounds = array<i64: 1>, scalar_prefetch = 0 : i64, scratch_operands = 0 : i64, tpu.core_type = #tpu.core_type<tc>, window_params = [{transform_indices = @transform_0, window_bounds = array<i64: 1>}, {transform_indices = @transform_1, window_bounds = array<i64: 2, 1024>}, {transform_indices = @transform_2, window_bounds = array<i64: 2, 1024>}, {transform_indices = @transform_3, window_bounds = array<i64: 2, 1024>}]} {
    %c0 = arith.constant 0 : index
    %c0_0 = arith.constant 0 : index
    %0 = vector.load %arg3[%c0, %c0_0] : memref<2x1024xi32, #tpu.memory_space<vmem>>, vector<2x1024xi32>
    %c8_i32 = arith.constant 8 : i32
    %1 = vector.broadcast %c8_i32 : i32 to vector<2x1024xi32>
    %2 = arith.shrui %0, %1 : vector<2x1024xi32>
    %c0_1 = arith.constant 0 : index
    %3 = memref.load %arg1[%c0_1] : memref<1xi32, #tpu.memory_space<smem>>
    %4 = vector.broadcast %3 : i32 to vector<2x1024xi32>
    %5 = arith.cmpi slt, %2, %4 : vector<2x1024xi32>
    %c0_2 = arith.constant 0 : index
    %c0_3 = arith.constant 0 : index
    %6 = vector.load %arg2[%c0_2, %c0_3] : memref<2x1024xf32, #tpu.memory_space<vmem>>, vector<2x1024xf32>
    %cst = arith.constant 0.000000e+00 : f32
    %7 = vector.broadcast %cst : f32 to vector<2x1024xf32>
    %8 = arith.select %5, %6, %7 : vector<2x1024xi1>, vector<2x1024xf32>
    %c0_4 = arith.constant 0 : index
    %c0_5 = arith.constant 0 : index
    %9 = vector.load %arg4[%c0_4, %c0_5] : memref<2x1024xf32, #tpu.memory_space<vmem>>, vector<2x1024xf32>
    tpu.vector_store %arg4[%c0_4, %c0_5], %8 {strides = array<i32>} : memref<2x1024xf32, #tpu.memory_space<vmem>>, vector<2x1024xf32>,
    return
  }
  func.func @transform_0(%arg0: i32) -> i32 {
    %c0_i32 = arith.constant 0 : i32
    %c0_i32_0 = arith.constant 0 : i32
    return %c0_i32 : i32
  }
  func.func @transform_1(%arg0: i32) -> (i32, i32) {
    %c0_i32 = arith.constant 0 : i32
    %c0_i32_0 = arith.constant 0 : i32
    return %arg0, %c0_i32 : i32, i32
  }
  func.func @transform_2(%arg0: i32) -> (i32, i32) {
    %c0_i32 = arith.constant 0 : i32
    %c0_i32_0 = arith.constant 0 : i32
    return %arg0, %c0_i32 : i32, i32
  }
  func.func @transform_3(%arg0: i32) -> (i32, i32) {
    %c0_i32 = arith.constant 0 : i32
    %c0_i32_0 = arith.constant 0 : i32
    return %arg0, %c0_i32 : i32, i32
  }
}

</mosaic_0001>

<llo_original>
// kernel: tpu_custom_call.1
$region0: #{tpu_custom_call.1}
  #allocation0 [shape = 'u32[]', space=smem, size = 0x4, offset = 0x4, fixed_abs, tag = 'smem constant byte address 0x4 - core index']
  #allocation1 [shape = 'u32[72,128]{1,0:T(1,128)}', space=vmem, size = 0x9000, scoped, tag = 'internal scratch']
  #allocation2 [shape = 's32[1]{0:T(128)S(6)}', space=smem, size = 0x200, scoped, tag = 'scoped memory for tpu_custom_call.1']
  %s0 = inlined_call_operand.<no memory space> [shape: s32[1], index: 0, kind: input, shape index: {}]
  %s1 = inlined_call_operand.hbm [shape: f32[2,1024], index: 1, kind: input, shape index: {}]
  %s2 = inlined_call_operand.hbm [shape: u32[2,1024], index: 2, kind: input, shape index: {}]
  %s3 = inlined_call_operand.hbm [shape: f32[2,1024], index: 3, kind: output, shape index: {}]
  %s4 = sld [smem:[#allocation0]]
  $region30: #{tpu_custom_call.1} parent=0
    _
  %s6 = ssub.s32 1, %s4
  %s7 = scalar_select 0, %s6, %s4
  %8 = sst [smem:[#allocation2]] %s0
  $region1: #{tpu_custom_call.1} parent=0
    #allocation3 [shape = 'u8[8192]{0}', space=vmem, size = 0x2000, scoped, tag = 'input window, operand 1, single buffered']
    #allocation4 [shape = 's32[1]{0}', space=sflag, size = 0x4, scoped, tag = 'scoped memory for tpu_custom_call.1']
    #allocation5 [shape = 's32[1]{0}', space=sflag, size = 0x4, scoped, tag = 'scoped memory for tpu_custom_call.1']
    #allocation6 [shape = 'u8[8192]{0}', space=vmem, size = 0x2000, scoped, tag = 'input window, operand 2, single buffered']
    #allocation7 [shape = 's32[1]{0}', space=sflag, size = 0x4, scoped, tag = 'scoped memory for tpu_custom_call.1']
    #allocation8 [shape = 'u8[8192]{0}', space=vmem, size = 0x2000, scoped, tag = 'output window, operand 0, single buffered']
    %9 = vsyncpa [#allocation4], 0
    %10 = vsyncpa [#allocation7], 0
    %11 = vsyncpa [#allocation5], 0
    // Predicated region
    $region2: #{tpu_custom_call.1} parent=1 // pred_check
      _
    $region3: #{tpu_custom_call.1} parent=1 // pred_check_branch
      %13 = sbr.rel (0) target = $region5
    $region4: #{tpu_custom_call.1} parent=1 // pred_region
      _
    $region5: #{tpu_custom_call.1} parent=1 // pred_fallthru
      _
    // Predicated region
    $region6: #{tpu_custom_call.1} parent=1 // pred_check
      _
    $region7: #{tpu_custom_call.1} parent=1 // pred_check_branch
      %15 = sbr.rel (0) target = $region9
    $region8: #{tpu_custom_call.1} parent=1 // pred_region
      %17 = vsyncadd [#allocation4], 0
      %s19 = sshll.u32 %s1, 4
      %s20 = int_to_ptr.hbm [resolvable:$true] %s19
      %s21 = sshll.u32 [#allocation3], 4
      %s22 = int_to_ptr.vmem [resolvable:$true] %s21
      %24 = dma.hbm_to_vmem [thread:$0]  %s20, 256, %s22, [#allocation4]
    $region9: #{tpu_custom_call.1} parent=1 // pred_fallthru
      _
    // Predicated region
    $region10: #{tpu_custom_call.1} parent=1 // pred_check
      _
    $region11: #{tpu_custom_call.1} parent=1 // pred_check_branch
      %26 = sbr.rel (0) target = $region13
    $region12: #{tpu_custom_call.1} parent=1 // pred_region
      %28 = vsyncadd [#allocation7], 0
      %s30 = sshll.u32 %s2, 4
      %s31 = int_to_ptr.hbm [resolvable:$true] %s30
      %s32 = sshll.u32 [#allocation6], 4
      %s33 = int_to_ptr.vmem [resolvable:$true] %s32
      %35 = dma.hbm_to_vmem [thread:$0]  %s31, 256, %s33, [#allocation7]
    $region13: #{tpu_custom_call.1} parent=1 // pred_fallthru
      _
    // Predicated region
    $region14: #{tpu_custom_call.1} parent=1 // pred_check
      _
    $region15: #{tpu_custom_call.1} parent=1 // pred_check_branch
      %37 = sbr.rel (0) target = $region17
    $region16: #{tpu_custom_call.1} parent=1 // pred_region
      %39 = dma.done [#allocation4], 256
    $region17: #{tpu_custom_call.1} parent=1 // pred_fallthru
      _
    // Predicated region
    $region18: #{tpu_custom_call.1} parent=1 // pred_check
      _
    $region19: #{tpu_custom_call.1} parent=1 // pred_check_branch
      %41 = sbr.rel (0) target = $region21
    $region20: #{tpu_custom_call.1} parent=1 // pred_region
      %43 = dma.done [#allocation7], 256
    $region21: #{tpu_custom_call.1} parent=1 // pred_fallthru
      _
    %v44 = vld [vmem:[#allocation6] sm:$0xff]
    %v45 = vld [vmem:[#allocation6 + $0x8] sm:$0xff]
    %v46 = vshrl.u32 %v44, 8
    %v47 = vshrl.u32 %v45, 8
    %s48 = sld [smem:[#allocation2]]
    %v49 = vstv %s48
    %vm50 = vcmp.lt.s32.totalorder %v46, %v49
    %vm51 = vcmp.lt.s32.totalorder %v47, %v49
    %v52 = vld [vmem:[#allocation3] sm:$0xff]
    %v53 = vld [vmem:[#allocation3 + $0x8] sm:$0xff]
    %v54 = vsel %vm50, %v52, 0.0
    %v55 = vsel %vm51, %v53, 0.0
    %56 = vst [vmem:[#allocation8] sm:$0xff] %v54
    %57 = vst [vmem:[#allocation8 + $0x8] sm:$0xff] %v55
    // Predicated region
    $region22: #{tpu_custom_call.1} parent=1 // pred_check
      _
    $region23: #{tpu_custom_call.1} parent=1 // pred_check_branch
      %59 = sbr.rel (0) target = $region25
    $region24: #{tpu_custom_call.1} parent=1 // pred_region
      %61 = vsyncadd [#allocation5], 0
      %s63 = sshll.u32 [#allocation8], 4
      %s64 = int_to_ptr.vmem [resolvable:$true] %s63
      %s65 = sshll.u32 %s3, 4
      %s66 = int_to_ptr.hbm [resolvable:$true] %s65
      %68 = dma.vmem_to_hbm [thread:$0]  %s64, 256, %s66, [#allocation5]
    $region25: #{tpu_custom_call.1} parent=1 // pred_fallthru
      _
    // Predicated region
    $region26: #{tpu_custom_call.1} parent=1 // pred_check
      _
    $region27: #{tpu_custom_call.1} parent=1 // pred_check_branch
      %70 = sbr.rel (0) target = $region29
    $region28: #{tpu_custom_call.1} parent=1 // pred_region
      %72 = dma.done [#allocation5], 256
    $region29: #{tpu_custom_call.1} parent=1 // pred_fallthru
      _
    %73 = vsyncpa [#allocation4], 1
    %74 = vsyncpa [#allocation7], 1
    %75 = vsyncpa [#allocation5], 1

</llo_original>
